<compile_context>
chip_gen: v7x
topology: tpu7x:2x2x1
jax: 0.10.0
libtpu: 0.0.40
codegen_flags: <defaults>
</compile_context>

<pallas_src>
import functools

import jax
import jax.numpy as jnp
from jax.experimental import pallas as pl
from jax.experimental.pallas import tpu as pltpu


@functools.lru_cache(maxsize=1)
def _vmem_limit_bytes():
    """Generation-aware VMEM budget: leave headroom for double-buffering."""
    cap = None
    try:
        cap = getattr(pltpu.get_tpu_info(), 'vmem_capacity_bytes', None)
    except Exception:
        cap = None
    if not cap:
        cap = 128 * 1024 * 1024
    return min(int(cap) * 3 // 4, 100 * 1024 * 1024)   # ~48 MiB v7x, ~96 MiB v5e/v6e


@functools.lru_cache(maxsize=1)
def _default_tiles():
    """Bigger matmul tiles on 128 MiB parts (v5e/v6e), conservative on v7x."""
    big = _vmem_limit_bytes() > 72 * 1024 * 1024
    return (512, 512, 1024) if big else (256, 256, 512)


def _cp(sem):
    return pltpu.CompilerParams(dimension_semantics=sem,
                                vmem_limit_bytes=_vmem_limit_bytes())


def _pick_tile(dim, target, align):
    """Largest divisor of `dim` that is <= target and a multiple of `align`
    (or the full dim when nothing fits / dim already small)."""
    if dim <= target:
        return dim
    t = (target // align) * align
    while t >= align:
        if dim % t == 0:
            return t
        t -= align
    return dim


# ----------------------------------------------------------------------------
# Fused tiled matmul:  out = [res +] (act_in(LN(x)) @ W + b)   (bf16 MXU, f32 acc)
# LN (when present) is computed once per row-block and cached in VMEM scratch.
# ----------------------------------------------------------------------------

def _fused_matmul_kernel(*refs, nk, has_ln, has_res, act_in, act_out, ln_eps):
    a_ref, w_ref, b_ref = refs[0], refs[1], refs[2]
    idx = 3
    if has_ln:
        g_ref, beta_ref = refs[idx], refs[idx + 1]
        idx += 2
    if has_res:
        r_ref = refs[idx]
        idx += 1
    o_ref = refs[idx]
    acc_ref = refs[idx + 1]
    xn_ref = refs[idx + 2] if has_ln else None

    k_idx = pl.program_id(2)

    @pl.when(k_idx == 0)
    def _():
        acc_ref[...] = jnp.zeros_like(acc_ref)

    if has_ln:
        # LN needs full K (tk == K, nk == 1).  Normalize once per row-block
        # (j == 0) and reuse the cached bf16 result for every N tile.
        @pl.when(pl.program_id(1) == 0)
        def _():
            a = a_ref[...].astype(jnp.float32)
            if act_in == 'silu':
                a = a * jax.nn.sigmoid(a)
            mu = jnp.mean(a, axis=-1, keepdims=True)
            var = jnp.mean((a - mu) ** 2, axis=-1, keepdims=True)
            a = (a - mu) * jax.lax.rsqrt(var + ln_eps)
            xn_ref[...] = (a * g_ref[...] + beta_ref[...]).astype(jnp.bfloat16)
        a = xn_ref[...]
    else:
        a = a_ref[...]
        if act_in == 'silu':
            a = a.astype(jnp.float32)
            a = (a * jax.nn.sigmoid(a)).astype(jnp.bfloat16)

    acc_ref[...] += jnp.dot(a, w_ref[...], preferred_element_type=jnp.float32)

    @pl.when(k_idx == nk - 1)
    def _():
        r = acc_ref[...] + b_ref[...]
        if has_res:
            r = r + r_ref[...].astype(jnp.float32)
        if act_out == 'silu':
            r = r * jax.nn.sigmoid(r)
        o_ref[...] = r.astype(o_ref.dtype)


def fused_matmul(a, w, b=None, *, residual=None, ln=None, ln_eps=1e-5,
                 act_in=None, act_out=None, out_dtype=jnp.bfloat16,
                 tm_t=None, tn_t=None, tk_t=None):
    M, K = a.shape
    K2, N = w.shape
    assert K == K2
    dm, dn, dk = _default_tiles()
    tm_t, tn_t, tk_t = tm_t or dm, tn_t or dn, tk_t or dk
    a = a.astype(jnp.bfloat16)
    w = w.astype(jnp.bfloat16)
    if b is None:
        b = jnp.zeros((N,), jnp.float32)
    b2 = b.reshape(1, N).astype(jnp.float32)

    tm = _pick_tile(M, tm_t, 16)                 # bf16: 16 sublane-rows / vreg
    tn = _pick_tile(N, tn_t, 128)
    tk = K if ln is not None else _pick_tile(K, tk_t, 128)   # LN needs full K
    gm, gn, gk = M // tm, N // tn, K // tk

    in_specs = [pl.BlockSpec((tm, tk), lambda i, j, k: (i, k)),
                pl.BlockSpec((tk, tn), lambda i, j, k: (k, j)),
                pl.BlockSpec((1, tn), lambda i, j, k: (0, j))]
    operands = [a, w, b2]
    if ln is not None:
        g, beta = ln
        in_specs += [pl.BlockSpec((1, tk), lambda i, j, k: (0, k)),
                     pl.BlockSpec((1, tk), lambda i, j, k: (0, k))]
        operands += [g.reshape(1, K).astype(jnp.float32),
                     beta.reshape(1, K).astype(jnp.float32)]
    if residual is not None:
        in_specs.append(pl.BlockSpec((tm, tn), lambda i, j, k: (i, j)))
        operands.append(residual.astype(jnp.bfloat16))

    scratch = [pltpu.VMEM((tm, tn), jnp.float32)]
    if ln is not None:
        scratch.append(pltpu.VMEM((tm, K), jnp.bfloat16))   # cached LN(x) row-block
    # j must stay on one core when the LN cache is keyed on j == 0.
    sem = (("parallel", "arbitrary", "arbitrary") if ln is not None
           else ("parallel", "parallel", "arbitrary"))

    kern = functools.partial(_fused_matmul_kernel, nk=gk,
                             has_ln=ln is not None,
                             has_res=residual is not None,
                             act_in=act_in, act_out=act_out, ln_eps=ln_eps)
    return pl.pallas_call(
        kern,
        out_shape=jax.ShapeDtypeStruct((M, N), out_dtype),
        grid=(gm, gn, gk),
        in_specs=in_specs,
        out_specs=pl.BlockSpec((tm, tn), lambda i, j, k: (i, j)),
        scratch_shapes=scratch,
        compiler_params=_cp(sem),
    )(*operands)


# ----------------------------------------------------------------------------
# Fused LayerNorm + GEGLU up-projection:  (LN(x)@Wv+bv) * gelu(LN(x)@Wg+bg)
# LN cached once per row-block in VMEM scratch (j == 0).
# ----------------------------------------------------------------------------

def _ln_geglu_kernel(x_ref, g_ref, b_ref, wv_ref, bv_ref, wg_ref, bg_ref,
                     o_ref, xn_ref, *, eps):
    @pl.when(pl.program_id(1) == 0)
    def _():
        x = x_ref[...].astype(jnp.float32)
        mu = jnp.mean(x, axis=-1, keepdims=True)
        var = jnp.mean((x - mu) ** 2, axis=-1, keepdims=True)
        x = (x - mu) * jax.lax.rsqrt(var + eps)
        xn_ref[...] = (x * g_ref[...] + b_ref[...]).astype(jnp.bfloat16)
    x = xn_ref[...]
    val = jnp.dot(x, wv_ref[...], preferred_element_type=jnp.float32) + bv_ref[...]
    gate = jnp.dot(x, wg_ref[...], preferred_element_type=jnp.float32) + bg_ref[...]
    # TODO(synk): torch GEGLU uses exact erf GELU; tanh approximation used for Mosaic-safe lowering.
    o_ref[...] = (val * jax.nn.gelu(gate, approximate=True)).astype(o_ref.dtype)


def ln_geglu(x2d, ln_g, ln_b, wv, bv, wg, bg, eps=1e-5):
    M, K = x2d.shape
    N = wv.shape[1]
    dm, dn, _ = _default_tiles()
    tm = _pick_tile(M, dm, 16)
    tn = _pick_tile(N, dn, 128)
    gm, gn = M // tm, N // tn
    return pl.pallas_call(
        functools.partial(_ln_geglu_kernel, eps=eps),
        out_shape=jax.ShapeDtypeStruct((M, N), jnp.bfloat16),
        grid=(gm, gn),
        in_specs=[pl.BlockSpec((tm, K), lambda i, j: (i, 0)),
                  pl.BlockSpec((1, K), lambda i, j: (0, 0)),
                  pl.BlockSpec((1, K), lambda i, j: (0, 0)),
                  pl.BlockSpec((K, tn), lambda i, j: (0, j)),
                  pl.BlockSpec((1, tn), lambda i, j: (0, j)),
                  pl.BlockSpec((K, tn), lambda i, j: (0, j)),
                  pl.BlockSpec((1, tn), lambda i, j: (0, j))],
        out_specs=pl.BlockSpec((tm, tn), lambda i, j: (i, j)),
        scratch_shapes=[pltpu.VMEM((tm, K), jnp.bfloat16)],
        compiler_params=_cp(("parallel", "arbitrary")),
    )(x2d.astype(jnp.bfloat16),
      ln_g.reshape(1, K).astype(jnp.float32),
      ln_b.reshape(1, K).astype(jnp.float32),
      wv.astype(jnp.bfloat16), bv.reshape(1, N).astype(jnp.float32),
      wg.astype(jnp.bfloat16), bg.reshape(1, N).astype(jnp.float32))


# ----------------------------------------------------------------------------
# GroupNorm (+ optional fused SiLU), vectorized over groups via indicator matmul.
# Two-pass (centered) variance for numerical safety.
# TODO(synk): spatial row-band tiling (two-pass stats) for v7x at large H*W*C.
# ----------------------------------------------------------------------------

def _group_norm_kernel(x_ref, g_ref, b_ref, ind_ref, o_ref, *, eps, act, inv_cnt):
    _, H, W, C = x_ref.shape
    x = x_ref[0].astype(jnp.float32).reshape(H * W, C)
    ind = ind_ref[...]                                              # (C, G)
    dn = (((1,), (1,)), ((), ()))                                   # contract G axis
    s = jnp.sum(x, axis=0, keepdims=True)                           # (1, C)
    mean_g = jnp.dot(s, ind, preferred_element_type=jnp.float32) * inv_cnt
    mean_c = jax.lax.dot_general(mean_g, ind, dn, preferred_element_type=jnp.float32)
    xc = x - mean_c
    ssq = jnp.sum(xc * xc, axis=0, keepdims=True)                   # (1, C)
    var_g = jnp.dot(ssq, ind, preferred_element_type=jnp.float32) * inv_cnt
    rstd_g = jax.lax.rsqrt(var_g + eps)
    rstd_c = jax.lax.dot_general(rstd_g, ind, dn, preferred_element_type=jnp.float32)
    y = xc * rstd_c * g_ref[...] + b_ref[...]
    if act:                                                          # fused SiLU
        y = y * jax.nn.sigmoid(y)
    o_ref[...] = y.reshape(1, H, W, C).astype(o_ref.dtype)


def group_norm(x, gamma, beta, groups, eps, act=False):
    B, H, W, C = x.shape
    cg = C // groups
    ind = (jnp.arange(C)[:, None] // cg ==
           jnp.arange(groups)[None, :]).astype(jnp.float32)          # (C, G)
    kern = functools.partial(_group_norm_kernel, eps=eps, act=act,
                             inv_cnt=1.0 / float(H * W * cg))
    return pl.pallas_call(
        kern,
        out_shape=jax.ShapeDtypeStruct((B, H, W, C), jnp.bfloat16),
        grid=(B,),
        in_specs=[pl.BlockSpec((1, H, W, C), lambda i: (i, 0, 0, 0)),
                  pl.BlockSpec((1, C), lambda i: (0, 0)),
                  pl.BlockSpec((1, C), lambda i: (0, 0)),
                  pl.BlockSpec((C, groups), lambda i: (0, 0))],
        out_specs=pl.BlockSpec((1, H, W, C), lambda i: (i, 0, 0, 0)),
        compiler_params=_cp(("parallel",)),
    )(x.astype(jnp.bfloat16), gamma.reshape(1, C).astype(jnp.float32),
      beta.reshape(1, C).astype(jnp.float32), ind)


# ----------------------------------------------------------------------------
# 3x3 conv (stride 1, pad 1) with fused bias + per-batch (temb) bias +
# residual add + output scale.  bf16 taps straight to the MXU, f32 accumulation.
# TODO(synk): row-band + Cout tiling (single-buffered weights) for v7x at real
#             UNet widths; roll-based dx shifts to avoid per-tap reshape copies;
#             fuse nearest-2x upsample into the input read.
# ----------------------------------------------------------------------------

def _conv3x3_kernel(*refs, has_res, scale):
    x_ref, w_ref, b_ref, pb_ref = refs[0], refs[1], refs[2], refs[3]
    if has_res:
        res_ref, o_ref = refs[4], refs[5]
    else:
        o_ref = refs[4]
    _, H, W, Cout = o_ref.shape
    Cin = x_ref.shape[-1]
    xp = x_ref[0]                                   # (H+2, W+2, Cin) bf16 (no f32 copy)
    acc = jnp.zeros((H * W, Cout), jnp.float32)
    for dy in range(3):
        for dx in range(3):
            patch = xp[dy:dy + H, dx:dx + W, :].reshape(H * W, Cin)
            acc = acc + jnp.dot(patch, w_ref[dy, dx],
                                preferred_element_type=jnp.float32)
    acc = acc + b_ref[...] + pb_ref[0]
    if has_res:
        acc = acc + res_ref[0].reshape(H * W, Cout).astype(jnp.float32)
    if scale != 1.0:
        acc = acc * scale
    o_ref[...] = acc.reshape(1, H, W, Cout).astype(o_ref.dtype)


def conv3x3(x, w, b, pb=None, residual=None, out_scale=1.0):
    B, H, W, Cin = x.shape
    Cout = w.shape[-1]
    xp = jnp.pad(x.astype(jnp.bfloat16), ((0, 0), (1, 1), (1, 1), (0, 0)))
    if pb is None:
        pb = jnp.zeros((B, Cout), jnp.float32)
    pb3 = pb.reshape(B, 1, Cout).astype(jnp.float32)
    in_specs = [pl.BlockSpec((1, H + 2, W + 2, Cin), lambda i: (i, 0, 0, 0)),
                pl.BlockSpec((3, 3, Cin, Cout), lambda i: (0, 0, 0, 0)),
                pl.BlockSpec((1, Cout), lambda i: (0, 0)),
                pl.BlockSpec((1, 1, Cout), lambda i: (i, 0, 0))]
    operands = [xp, w.astype(jnp.bfloat16),
                b.reshape(1, Cout).astype(jnp.float32), pb3]
    if residual is not None:
        in_specs.append(pl.BlockSpec((1, H, W, Cout), lambda i: (i, 0, 0, 0)))
        operands.append(residual.astype(jnp.bfloat16))
    kern = functools.partial(_conv3x3_kernel, has_res=residual is not None,
                             scale=float(out_scale))
    return pl.pallas_call(
        kern,
        out_shape=jax.ShapeDtypeStruct((B, H, W, Cout), jnp.bfloat16),
        grid=(B,),
        in_specs=in_specs,
        out_specs=pl.BlockSpec((1, H, W, Cout), lambda i: (i, 0, 0, 0)),
        compiler_params=_cp(("parallel",)),
    )(*operands)


# ----------------------------------------------------------------------------
# Flash-style multi-head attention: grid (B, q-tiles, kv-tiles), online softmax
# with f32 m/l/acc scratch; all heads batched in a single einsum (no per-head
# loop, no f32 upcast, no concat).  Softmax denom via EUP reciprocal.
# ----------------------------------------------------------------------------

def _flash_mha_kernel(q_ref, k_ref, v_ref, o_ref, m_sc, l_sc, acc_sc, *, scale):
    kv = pl.program_id(2)

    @pl.when(kv == 0)
    def _():
        m_sc[...] = jnp.full_like(m_sc, -jnp.inf)
        l_sc[...] = jnp.zeros_like(l_sc)
        acc_sc[...] = jnp.zeros_like(acc_sc)

    q = q_ref[0] * scale                        # (heads, tq, d) bf16, scale folded in
    k = k_ref[0]                                # (heads, tkv, d) bf16
    v = v_ref[0]
    s = jnp.einsum('hqd,hkd->hqk', q, k, preferred_element_type=jnp.float32)
    m_prev = m_sc[...]
    m_new = jnp.maximum(m_prev, s.max(-1, keepdims=True))
    alpha = jnp.exp(m_prev - m_new)
    p = jnp.exp(s - m_new)
    l_sc[...] = alpha * l_sc[...] + p.sum(-1, keepdims=True)
    acc_sc[...] = alpha * acc_sc[...] + jnp.einsum(
        'hqk,hkd->hqd', p.astype(v.dtype), v, preferred_element_type=jnp.float32)
    m_sc[...] = m_new

    @pl.when(kv == pl.num_programs(2) - 1)
    def _():
        out = acc_sc[...] * pl.reciprocal(l_sc[...], approx=True)
        o_ref[...] = out.reshape(o_ref.shape).astype(o_ref.dtype)


def multi_head_attention(q, k, v, heads, scale, tq_t=256, tkv_t=256):
    B, S, C = q.shape
    Skv = k.shape[1]
    d = C // heads
    qh = q.reshape(B, S, heads, d).transpose(0, 2, 1, 3).astype(jnp.bfloat16)
    kh = k.reshape(B, Skv, heads, d).transpose(0, 2, 1, 3).astype(jnp.bfloat16)
    vh = v.reshape(B, Skv, heads, d).transpose(0, 2, 1, 3).astype(jnp.bfloat16)
    tq = _pick_tile(S, tq_t, 8)
    tkv = _pick_tile(Skv, tkv_t, 8)
    kern = functools.partial(_flash_mha_kernel, scale=float(scale))
    out = pl.pallas_call(
        kern,
        out_shape=jax.ShapeDtypeStruct((B, heads, S, d), jnp.bfloat16),
        grid=(B, S // tq, Skv // tkv),
        in_specs=[pl.BlockSpec((1, heads, tq, d), lambda b, qi, ki: (b, 0, qi, 0)),
                  pl.BlockSpec((1, heads, tkv, d), lambda b, qi, ki: (b, 0, ki, 0)),
                  pl.BlockSpec((1, heads, tkv, d), lambda b, qi, ki: (b, 0, ki, 0))],
        out_specs=pl.BlockSpec((1, heads, tq, d), lambda b, qi, ki: (b, 0, qi, 0)),
        scratch_shapes=[pltpu.VMEM((heads, tq, 1), jnp.float32),
                        pltpu.VMEM((heads, tq, 1), jnp.float32),
                        pltpu.VMEM((heads, tq, d), jnp.float32)],
        compiler_params=_cp(("parallel", "parallel", "arbitrary")),
    )(qh, kh, vh)
    return out.transpose(0, 2, 1, 3).reshape(B, S, C)


# ----------------------------------------------------------------------------
# Module-level building blocks (glue around the kernels)
# ----------------------------------------------------------------------------

def attn_block(h, ctx, p, heads, ln_g, ln_b):
    """Pre-norm attention: returns h + Attn(LN(h), ctx).  LN fused into the
    projection; q/k/v (self) or k/v (cross) projections merged into one matmul."""
    B, S, C = h.shape
    h2 = h.reshape(B * S, C)
    if ctx is None:                                     # self-attention: fused qkv
        wqkv = jnp.concatenate([p['wq'], p['wk'], p['wv']], axis=1)     # (C, 3C)
        qkv = fused_matmul(h2, wqkv, ln=(ln_g, ln_b))
        q = qkv[:, :C].reshape(B, S, C)
        k = qkv[:, C:2 * C].reshape(B, S, C)
        v = qkv[:, 2 * C:].reshape(B, S, C)
    else:                                               # cross-attention: fused kv
        Skv, Ck = ctx.shape[1], ctx.shape[2]
        ctx2 = ctx.reshape(B * Skv, Ck)
        q = fused_matmul(h2, p['wq'], ln=(ln_g, ln_b)).reshape(B, S, C)
        wkv = jnp.concatenate([p['wk'], p['wv']], axis=1)               # (Ck, 2C)
        kv = fused_matmul(ctx2, wkv)
        k = kv[:, :C].reshape(B, Skv, C)
        v = kv[:, C:].reshape(B, Skv, C)
    d = C // heads
    a = multi_head_attention(q, k, v, heads, float(d) ** -0.5)
    out = fused_matmul(a.reshape(B * S, C), p['wo'], p['bo'], residual=h2)
    return out.reshape(B, S, C)


def ff_block(h, p, ln_g, ln_b):
    """Pre-norm GEGLU feed-forward: h + W2(GEGLU(LN(h)))."""
    B, S, C = h.shape
    h2 = h.reshape(B * S, C)
    g = ln_geglu(h2, ln_g, ln_b, p['w1v'], p['b1v'], p['w1g'], p['b1g'])
    out = fused_matmul(g, p['w2'], p['b2'], residual=h2)
    return out.reshape(B, S, C)


def transformer_2d(x, ctx, p, heads, groups):
    """Transformer2DModel forward (continuous-input variant, 1 block)."""
    B, H, W, C = x.shape
    residual2 = x.reshape(B * H * W, C)
    h = group_norm(x, p['gn_g'], p['gn_b'], groups, 1e-6, act=False)
    h = fused_matmul(h.reshape(B * H * W, C), p['proj_in_w'], p['proj_in_b'])
    h = h.reshape(B, H * W, C)
    h = attn_block(h, None, p['attn1'], heads, p['ln1_g'], p['ln1_b'])
    h = attn_block(h, ctx, p['attn2'], heads, p['ln2_g'], p['ln2_b'])
    h = ff_block(h, p['ff'], p['ln3_g'], p['ln3_b'])
    out = fused_matmul(h.reshape(B * H * W, C), p['proj_out_w'],
                       p['proj_out_b'], residual=residual2)      # + residual fused
    return out.reshape(B, H, W, C)


def resnet_block(x, temb, p, groups, eps, output_scale_factor):
    B, H, W, Cin = x.shape
    Cout = p['c1_w'].shape[-1]
    h = group_norm(x, p['n1_g'], p['n1_b'], groups, eps, act=True)   # GN + SiLU fused
    t = fused_matmul(temb, p['t_w'], p['t_b'], act_in='silu',
                     out_dtype=jnp.float32)                          # SiLU + proj fused
    h = conv3x3(h, p['c1_w'], p['c1_b'], pb=t)                       # temb add fused
    h = group_norm(h, p['n2_g'], p['n2_b'], groups, eps, act=True)
    if 'sc_w' in p:
        sc = fused_matmul(x.reshape(B * H * W, Cin), p['sc_w'],
                          p['sc_b']).reshape(B, H, W, Cout)          # 1x1 conv_shortcut
    else:
        sc = x
    # dropout p=0.0 -> identity; residual add + output scale fused into conv2
    return conv3x3(h, p['c2_w'], p['c2_b'], residual=sc,
                   out_scale=1.0 / float(output_scale_factor))


def upsample_2d(x, p):
    # TODO(synk): fuse the nearest-2x upsample into the conv input read to avoid
    #             materializing the 4x activation in HBM (biggest win on v5e).
    x = jnp.repeat(jnp.repeat(x, 2, axis=1), 2, axis=2)
    return conv3x3(x, p['w'], p['b'])


def multi_cross_attn_up_block_2d(hidden_states, res_hidden_states_tuple, temb,
                                 encoder_hidden_states, params, cfg):
    """Inputs in PyTorch NCHW; internally NHWC/bf16; output NCHW f32."""
    x = jnp.transpose(hidden_states, (0, 2, 3, 1)).astype(jnp.bfloat16)
    res_tuple = tuple(res_hidden_states_tuple)
    temb_b = temb.astype(jnp.bfloat16)
    enc = {k: (None if v is None else v.astype(jnp.bfloat16))
           for k, v in encoder_hidden_states.items()}
    for i in range(cfg['num_layers']):
        res = jnp.transpose(res_tuple[-1], (0, 2, 3, 1)).astype(jnp.bfloat16)
        res_tuple = res_tuple[:-1]
        x = jnp.concatenate([x, res], axis=-1)          # channel concat (dim=1 NCHW)
        x = resnet_block(x, temb_b, params['resnets'][i], cfg['resnet_groups'],
                         cfg['resnet_eps'], cfg['output_scale_factor'])
        conds = []
        for k in cfg['cond_keys']:
            if enc.get(k) is not None:
                conds.append(transformer_2d(x, enc[k], params['attentions'][k][i],
                                            cfg['attn_num_head_channels'][k],
                                            cfg['resnet_groups']))   # stays bf16
        acc = conds[0].astype(jnp.float32)
        for c in conds[1:]:
            acc = acc + c.astype(jnp.float32)
        x = (acc / float(len(conds))).astype(jnp.bfloat16)           # mean over streams
    if cfg['add_upsample']:
        x = upsample_2d(x, params['upsampler'])
    return jnp.transpose(x.astype(jnp.float32), (0, 3, 1, 2))


# ----------------------------------------------------------------------------
# Deterministic parameter init (synthetic — shapes follow the module __init__)
# ----------------------------------------------------------------------------

def init_params(key, cfg):
    counter = [0]

    def nk():
        counter[0] += 1
        return jax.random.fold_in(key, counter[0])

    def w(shape, scale=0.02):
        return (scale * jax.random.normal(nk(), shape)).astype(jnp.bfloat16)

    def ones(n):
        return jnp.ones((n,), jnp.float32)

    def zeros(n):
        return jnp.zeros((n,), jnp.float32)

    C = cfg['out_channels']
    resnets = []
    attentions = {k: [] for k in cfg['cond_keys']}
    for i in range(cfg['num_layers']):
        res_skip = cfg['in_channels'] if i == cfg['num_layers'] - 1 else C
        res_in = cfg['prev_output_channel'] if i == 0 else C
        cin = res_in + res_skip
        rp = dict(
            n1_g=ones(cin), n1_b=zeros(cin),
            c1_w=w((3, 3, cin, C)), c1_b=zeros(C),
            t_w=w((cfg['temb_channels'], C)), t_b=zeros(C),
            n2_g=ones(C), n2_b=zeros(C),
            c2_w=w((3, 3, C, C)), c2_b=zeros(C),
        )
        if cin != C:
            rp['sc_w'] = w((cin, C))
            rp['sc_b'] = zeros(C)
        resnets.append(rp)
        for k in cfg['cond_keys']:
            cd = cfg['cross_attention_dim'][k]
            ap = dict(
                gn_g=ones(C), gn_b=zeros(C),
                proj_in_w=w((C, C)), proj_in_b=zeros(C),
                ln1_g=ones(C), ln1_b=zeros(C),
                attn1=dict(wq=w((C, C)), wk=w((C, C)), wv=w((C, C)),
                           wo=w((C, C)), bo=zeros(C)),
                ln2_g=ones(C), ln2_b=zeros(C),
                attn2=dict(wq=w((C, C)), wk=w((cd, C)), wv=w((cd, C)),
                           wo=w((C, C)), bo=zeros(C)),
                ln3_g=ones(C), ln3_b=zeros(C),
                ff=dict(w1v=w((C, 4 * C)), b1v=zeros(4 * C),     # GEGLU value half
                        w1g=w((C, 4 * C)), b1g=zeros(4 * C),     # GEGLU gate half
                        w2=w((4 * C, C)), b2=zeros(C)),
                proj_out_w=w((C, C)), proj_out_b=zeros(C),
            )
            attentions[k].append(ap)
    params = dict(resnets=resnets, attentions=attentions)
    if cfg['add_upsample']:
        params['upsampler'] = dict(w=w((3, 3, C, C)), b=zeros(C))
    return params


# ----------------------------------------------------------------------------

if __name__ == "__main__":
    cfg = dict(
        in_channels=16, out_channels=32, prev_output_channel=16,
        temb_channels=32, num_layers=1, resnet_eps=1e-6, resnet_groups=4,
        attn_num_head_channels={'text': 8, 'char': 4},
        cross_attention_dim={'text': 64, 'char': 32},
        output_scale_factor=1.0, add_upsample=True,
        cond_keys=['text', 'char'],
    )

    key = jax.random.PRNGKey(0)
    k1, k2, k3, k4, k5, kp = jax.random.split(key, 6)
    B, H, W, seq = 2, 8, 8, 8

    params = init_params(kp, cfg)
    hidden_states = jax.random.normal(k1, (B, cfg['prev_output_channel'], H, W),
                                      dtype=jnp.float32)
    res_hidden_states_tuple = (
        jax.random.normal(k2, (B, cfg['in_channels'], H, W), dtype=jnp.float32),
    )
    temb = jax.random.normal(k3, (B, cfg['temb_channels']), dtype=jnp.float32)
    encoder_hidden_states = {
        'text': jax.random.normal(k4, (B, seq, cfg['cross_attention_dim']['text']),
                                  dtype=jnp.float32),
        'char': jax.random.normal(k5, (B, seq, cfg['cross_attention_dim']['char']),
                                  dtype=jnp.float32),
    }

    out = multi_cross_attn_up_block_2d(hidden_states, res_hidden_states_tuple,
                                       temb, encoder_hidden_states, params, cfg)
    out = jax.block_until_ready(out)
    assert out.shape == (B, cfg['out_channels'], 2 * H, 2 * W), out.shape
    assert bool(jnp.all(jnp.isfinite(out)))
    print("KERNEL_OK")
</pallas_src>

<mosaic_0001>
module attributes {stable_mosaic.version = 11 : i64} {
  func.func @_group_norm_kernel(%arg0: i32, %arg1: memref<1x8x8x32xbf16, #tpu.memory_space<vmem>>, %arg2: memref<1x32xf32, #tpu.memory_space<vmem>>, %arg3: memref<1x32xf32, #tpu.memory_space<vmem>>, %arg4: memref<32x4xf32, #tpu.memory_space<vmem>>, %arg5: memref<1x8x8x32xbf16, #tpu.memory_space<vmem>>) attributes {dimension_semantics = [#tpu.dimension_semantics<parallel>], iteration_bounds = array<i64: 2>, scalar_prefetch = 0 : i64, scratch_operands = 0 : i64, tpu.core_type = #tpu.core_type<tc>, window_params = [{transform_indices = @transform_0, window_bounds = array<i64: 1, 8, 8, 32>}, {pipeline_mode = #tpu.pipeline_mode<synchronous>, transform_indices = @transform_1, window_bounds = array<i64: 1, 32>}, {pipeline_mode = #tpu.pipeline_mode<synchronous>, transform_indices = @transform_2, window_bounds = array<i64: 1, 32>}, {pipeline_mode = #tpu.pipeline_mode<synchronous>, transform_indices = @transform_3, window_bounds = array<i64: 32, 4>}, {transform_indices = @transform_4, window_bounds = array<i64: 1, 8, 8, 32>}]} {
    %c0 = arith.constant 0 : index
    %c0_0 = arith.constant 0 : index
    %c0_1 = arith.constant 0 : index
    %c0_2 = arith.constant 0 : index
    %0 = vector.load %arg1[%c0, %c0_0, %c0_1, %c0_2] : memref<1x8x8x32xbf16, #tpu.memory_space<vmem>>, vector<1x8x8x32xbf16>
    %1 = vector.shape_cast %0 : vector<1x8x8x32xbf16> to vector<8x8x32xbf16>
    %2 = arith.extf %1 : vector<8x8x32xbf16> to vector<8x8x32xf32>
    %3 = vector.shape_cast %2 : vector<8x8x32xf32> to vector<64x32xf32>
    %c0_3 = arith.constant 0 : index
    %c0_4 = arith.constant 0 : index
    %4 = vector.load %arg4[%c0_3, %c0_4] : memref<32x4xf32, #tpu.memory_space<vmem>>, vector<32x4xf32>
    %cst = arith.constant dense<0.000000e+00> : vector<32xf32>
    %5 = vector.multi_reduction <add>, %3, %cst [0] : vector<64x32xf32> to vector<32xf32>
    %6 = vector.shape_cast %5 : vector<32xf32> to vector<1x32xf32>
    %cst_5 = arith.constant dense<0.000000e+00> : vector<1x4xf32>
    %7 = tpu.matmul %6, %4, %cst_5 {dimension_numbers = #tpu.dot_dimension_numbers<[1], [0], [0], [1], [0, 0, 1, 1], [], []>} : vector<1x32xf32>, vector<32x4xf32>, vector<1x4xf32> -> vector<1x4xf32>
    %cst_6 = arith.constant 0.001953125 : f32
    %8 = vector.broadcast %cst_6 : f32 to vector<1x4xf32>
    %9 = arith.mulf %7, %8 : vector<1x4xf32>
    %cst_7 = arith.constant dense<0.000000e+00> : vector<1x32xf32>
    %10 = tpu.matmul %9, %4, %cst_7 {dimension_numbers = #tpu.dot_dimension_numbers<[1], [1], [0], [0], [0, 0, 1, 0], [], []>} : vector<1x4xf32>, vector<32x4xf32>, vector<1x32xf32> -> vector<1x32xf32>
    %11 = vector.broadcast %10 : vector<1x32xf32> to vector<64x32xf32>
    %12 = arith.subf %3, %11 : vector<64x32xf32>
    %13 = arith.mulf %12, %12 : vector<64x32xf32>
    %cst_8 = arith.constant dense<0.000000e+00> : vector<32xf32>
    %14 = vector.multi_reduction <add>, %13, %cst_8 [0] : vector<64x32xf32> to vector<32xf32>
    %15 = vector.shape_cast %14 : vector<32xf32> to vector<1x32xf32>
    %cst_9 = arith.constant dense<0.000000e+00> : vector<1x4xf32>
    %16 = tpu.matmul %15, %4, %cst_9 {dimension_numbers = #tpu.dot_dimension_numbers<[1], [0], [0], [1], [0, 0, 1, 1], [], []>} : vector<1x32xf32>, vector<32x4xf32>, vector<1x4xf32> -> vector<1x4xf32>
    %cst_10 = arith.constant 0.001953125 : f32
    %17 = vector.broadcast %cst_10 : f32 to vector<1x4xf32>
    %18 = arith.mulf %16, %17 : vector<1x4xf32>
    %cst_11 = arith.constant 9.99999997E-7 : f32
    %19 = vector.broadcast %cst_11 : f32 to vector<1x4xf32>
    %20 = arith.addf %18, %19 : vector<1x4xf32>
    %21 = math.rsqrt %20 : vector<1x4xf32>
    %cst_12 = arith.constant dense<0.000000e+00> : vector<1x32xf32>
    %22 = tpu.matmul %21, %4, %cst_12 {dimension_numbers = #tpu.dot_dimension_numbers<[1], [1], [0], [0], [0, 0, 1, 0], [], []>} : vector<1x4xf32>, vector<32x4xf32>, vector<1x32xf32> -> vector<1x32xf32>
    %23 = vector.broadcast %22 : vector<1x32xf32> to vector<64x32xf32>
    %24 = arith.mulf %12, %23 : vector<64x32xf32>
    %c0_13 = arith.constant 0 : index
    %c0_14 = arith.constant 0 : index
    %25 = vector.load %arg2[%c0_13, %c0_14] : memref<1x32xf32, #tpu.memory_space<vmem>>, vector<1x32xf32>
    %26 = vector.broadcast %25 : vector<1x32xf32> to vector<64x32xf32>
    %27 = arith.mulf %24, %26 : vector<64x32xf32>
    %c0_15 = arith.constant 0 : index
    %c0_16 = arith.constant 0 : index
    %28 = vector.load %arg3[%c0_15, %c0_16] : memref<1x32xf32, #tpu.memory_space<vmem>>, vector<1x32xf32>
    %29 = vector.broadcast %28 : vector<1x32xf32> to vector<64x32xf32>
    %30 = arith.addf %27, %29 : vector<64x32xf32>
    %31 = arith.negf %30 : vector<64x32xf32>
    %32 = math.exp %31 : vector<64x32xf32>
    %cst_17 = arith.constant 1.000000e+00 : f32
    %33 = vector.broadcast %cst_17 : f32 to vector<64x32xf32>
    %34 = arith.addf %33, %32 : vector<64x32xf32>
    %35 = arith.divf %33, %34 : vector<64x32xf32>
    %36 = arith.mulf %30, %35 : vector<64x32xf32>
    %37 = vector.shape_cast %36 : vector<64x32xf32> to vector<1x8x8x32xf32>
    %38 = arith.truncf %37 : vector<1x8x8x32xf32> to vector<1x8x8x32xbf16>
    %c0_18 = arith.constant 0 : index
    %c0_19 = arith.constant 0 : index
    %c0_20 = arith.constant 0 : index
    %c0_21 = arith.constant 0 : index
    %39 = vector.load %arg5[%c0_18, %c0_19, %c0_20, %c0_21] : memref<1x8x8x32xbf16, #tpu.memory_space<vmem>>, vector<1x8x8x32xbf16>
    tpu.vector_store %arg5[%c0_18, %c0_19, %c0_20, %c0_21], %38 {strides = array<i32>} : memref<1x8x8x32xbf16, #tpu.memory_space<vmem>>, vector<1x8x8x32xbf16>,
    return
  }
  func.func @transform_0(%arg0: i32) -> (i32, i32, i32, i32) {
    %c0_i32 = arith.constant 0 : i32
    %c0_i32_0 = arith.constant 0 : i32
    %c0_i32_1 = arith.constant 0 : i32
    %c0_i32_2 = arith.constant 0 : i32
    return %arg0, %c0_i32, %c0_i32_0, %c0_i32_1 : i32, i32, i32, i32
  }
  func.func @transform_1(%arg0: i32) -> (i32, i32) {
    %c0_i32 = arith.constant 0 : i32
    %c0_i32_0 = arith.constant 0 : i32
    %c0_i32_1 = arith.constant 0 : i32
    return %c0_i32, %c0_i32_0 : i32, i32
  }
  func.func @transform_2(%arg0: i32) -> (i32, i32) {
    %c0_i32 = arith.constant 0 : i32
    %c0_i32_0 = arith.constant 0 : i32
    %c0_i32_1 = arith.constant 0 : i32
    return %c0_i32, %c0_i32_0 : i32, i32
  }
  func.func @transform_3(%arg0: i32) -> (i32, i32) {
    %c0_i32 = arith.constant 0 : i32
    %c0_i32_0 = arith.constant 0 : i32
    %c0_i32_1 = arith.constant 0 : i32
    return %c0_i32, %c0_i32_0 : i32, i32
  }
  func.func @transform_4(%arg0: i32) -> (i32, i32, i32, i32) {
    %c0_i32 = arith.constant 0 : i32
    %c0_i32_0 = arith.constant 0 : i32
    %c0_i32_1 = arith.constant 0 : i32
    %c0_i32_2 = arith.constant 0 : i32
    return %arg0, %c0_i32, %c0_i32_0, %c0_i32_1 : i32, i32, i32, i32
  }
}

</mosaic_0001>

<llo_original>
// kernel: tpu_custom_call.1
$region0: #{tpu_custom_call.1}
  #allocation0 [shape = 'u32[]', space=smem, size = 0x4, offset = 0x4, fixed_abs, tag = 'smem constant byte address 0x4 - core index']
  #allocation1 [shape = 'u32[144,128]{1,0:T(1,128)}', space=vmem, size = 0x12000, scoped, tag = 'internal scratch']
  %s0 = inlined_call_operand.hbm [shape: bf16[2,8,8,32], index: 0, kind: input, shape index: {}]
  %s1 = inlined_call_operand.hbm [shape: f32[1,32], index: 1, kind: input, shape index: {}]
  %s2 = inlined_call_operand.hbm [shape: f32[1,32], index: 2, kind: input, shape index: {}]
  %s3 = inlined_call_operand.hbm [shape: f32[32,4], index: 3, kind: input, shape index: {}]
  %s4 = inlined_call_operand.hbm [shape: bf16[2,8,8,32], index: 4, kind: output, shape index: {}]
  %s5 = sld [smem:[#allocation0]]
  $region65: #{tpu_custom_call.1} parent=0
    _
  %s7 = ssub.s32 1, %s5
  %s8 = scalar_select 0, %s7, %s5
  $region1: #{tpu_custom_call.1} parent=0
    #allocation2 [shape = 'u8[32768]{0}', space=vmem, size = 0x8000, scoped, tag = 'input window, operand 0']
    #allocation3 [shape = 's32[2]{0}', space=sflag, size = 0x8, scoped, tag = 'scoped memory for tpu_custom_call.1']
    #allocation4 [shape = 's32[2]{0}', space=sflag, size = 0x8, scoped, tag = 'scoped memory for tpu_custom_call.1']
    #allocation5 [shape = 'u8[512]{0}', space=vmem, size = 0x400, scoped, tag = 'input window, operand 1, single buffered']
    #allocation6 [shape = 's32[1]{0}', space=sflag, size = 0x4, scoped, tag = 'scoped memory for tpu_custom_call.1']
    #allocation7 [shape = 'u8[512]{0}', space=vmem, size = 0x400, scoped, tag = 'input window, operand 2, single buffered']
    #allocation8 [shape = 'u8[16384]{0}', space=vmem, size = 0x4000, scoped, tag = 'input window, operand 3, single buffered']
    #allocation9 [shape = 's32[1]{0}', space=sflag, size = 0x4, scoped, tag = 'scoped memory for tpu_custom_call.1']
    #allocation10 [shape = 'u8[32768]{0}', space=vmem, size = 0x8000, scoped, tag = 'output window, operand 0']
    %9 = vsyncpa [#allocation3], 0
    %s10 = scalar_lea.sflag [#allocation3], 1
    %11 = vsyncpa %s10, 0
    %12 = vsyncpa [#allocation6], 0
    %13 = vsyncpa [#allocation9], 0
    %14 = vsyncpa [#allocation4], 0
    %s15 = scalar_lea.sflag [#allocation4], 1
    %16 = vsyncpa %s15, 0
    loop: start=0, step=1, limit=4
    $region2: #{tpu_custom_call.1} parent=1 // loop_pre_header
      _
    $region3: #{tpu_custom_call.1} parent=1 // loop_header
      %s18 = sphi 0, %s22
      %p19 = scmp.ge.s32.totalorder %s18, 4
      %s28 = sphi 0, %s30
      %s31 = sphi 0, %s28
      %s32 = sphi 0, %s31
      %s48 = sphi 0, %s32
      %s52 = sphi 0, %s52
      %s54 = sphi 0, %s52
      %s55 = sphi 0, %s54
      %s69 = sphi 0, %s55
      %s73 = sphi 0, %s73
      %s75 = sphi 0, %s73
      %s76 = sphi 0, %s75
      %s90 = sphi 0, %s76
      %s94 = sphi 0, %s94
      %s96 = sphi 0, %s94
      %s97 = sphi 0, %s96
      %s111 = sphi 0, %s97
      %s117 = sphi 0, %s119
      %s120 = sphi 0, %s117
      %s121 = sphi 0, %s120
      %s137 = sphi 0, %s121
    $region4: #{tpu_custom_call.1} parent=1 // loop_header_branch
      %21 = sbr.rel (%p19) target = $region8
    $region5: #{tpu_custom_call.1} parent=1 // loop_body
      %s23 = ssub.s32 %s18, 1
      %s24 = ssub.s32 %s18, 2
      %s25 = sadd.s32 %s18, 1
      %s26 = ssub.s32 %s18, %s25
      %p27 = scmp.eq.s32.totalorder %s26, 0
      %s29 = sadd.s32 %s28, 1
      %s30 = scalar_select %p27, %s28, %s29
      %p33 = pneg %p27
      %p34 = scmp.eq.s32.totalorder %s18, 1
      %p35 = por %p33, %p34
      %p36 = scmp.ne.s32.totalorder %s28, %s31
      %p37 = scmp.eq.s32.totalorder %s18, 0
      %p38 = por %p36, %p37
      %p39 = scmp.ne.s32.totalorder %s28, %s31
      %p40 = scmp.eq.s32.totalorder %s23, 1
      %p41 = por %p39, %p40
      %p42 = scmp.ne.s32.totalorder %s31, %s32
      %p43 = scmp.eq.s32.totalorder %s23, 0
      %p44 = por %p42, %p43
      %p45 = scmp.ne.s32.totalorder %s31, %s32
      %p46 = scmp.eq.s32.totalorder %s24, 1
      %p47 = por %p45, %p46
      %p49 = scmp.ne.s32.totalorder %s32, %s48
      %p50 = scmp.eq.s32.totalorder %s24, 0
      %p51 = por %p49, %p50
      %s53 = sadd.s32 %s52, 1
      %p56 = scmp.eq.s32.totalorder %s18, 1
      %p57 = scmp.ne.s32.totalorder %s52, %s54
      %p58 = scmp.eq.s32.totalorder %s18, 0
      %p59 = por %p57, %p58
      %p60 = scmp.ne.s32.totalorder %s52, %s54
      %p61 = scmp.eq.s32.totalorder %s23, 1
      %p62 = por %p60, %p61
      %p63 = scmp.ne.s32.totalorder %s54, %s55
      %p64 = scmp.eq.s32.totalorder %s23, 0
      %p65 = por %p63, %p64
      %p66 = scmp.ne.s32.totalorder %s54, %s55
      %p67 = scmp.eq.s32.totalorder %s24, 1
      %p68 = por %p66, %p67
      %p70 = scmp.ne.s32.totalorder %s55, %s69
      %p71 = scmp.eq.s32.totalorder %s24, 0
      %p72 = por %p70, %p71
      %s74 = sadd.s32 %s73, 1
      %p77 = scmp.eq.s32.totalorder %s18, 1
      %p78 = scmp.ne.s32.totalorder %s73, %s75
      %p79 = scmp.eq.s32.totalorder %s18, 0
      %p80 = por %p78, %p79
      %p81 = scmp.ne.s32.totalorder %s73, %s75
      %p82 = scmp.eq.s32.totalorder %s23, 1
      %p83 = por %p81, %p82
      %p84 = scmp.ne.s32.totalorder %s75, %s76
      %p85 = scmp.eq.s32.totalorder %s23, 0
      %p86 = por %p84, %p85
      %p87 = scmp.ne.s32.totalorder %s75, %s76
      %p88 = scmp.eq.s32.totalorder %s24, 1
      %p89 = por %p87, %p88
      %p91 = scmp.ne.s32.totalorder %s76, %s90
      %p92 = scmp.eq.s32.totalorder %s24, 0
      %p93 = por %p91, %p92
      %s95 = sadd.s32 %s94, 1
      %p98 = scmp.eq.s32.totalorder %s18, 1
      %p99 = scmp.ne.s32.totalorder %s94, %s96
      %p100 = scmp.eq.s32.totalorder %s18, 0
      %p101 = por %p99, %p100
      %p102 = scmp.ne.s32.totalorder %s94, %s96
      %p103 = scmp.eq.s32.totalorder %s23, 1
      %p104 = por %p102, %p103
      %p105 = scmp.ne.s32.totalorder %s96, %s97
      %p106 = scmp.eq.s32.totalorder %s23, 0
      %p107 = por %p105, %p106
      %p108 = scmp.ne.s32.totalorder %s96, %s97
      %p109 = scmp.eq.s32.totalorder %s24, 1
      %p110 = por %p108, %p109
      %p112 = scmp.ne.s32.totalorder %s97, %s111
      %p113 = scmp.eq.s32.totalorder %s24, 0
      %p114 = por %p112, %p113
      %s115 = ssub.s32 %s18, %s25
      %p116 = scmp.eq.s32.totalorder %s115, 0
      %s118 = sadd.s32 %s117, 1
      %s119 = scalar_select %p116, %s117, %s118
      %p122 = pneg %p116
      %p123 = scmp.eq.s32.totalorder %s18, 1
      %p124 = por %p122, %p123
      %p125 = scmp.ne.s32.totalorder %s117, %s120
      %p126 = scmp.eq.s32.totalorder %s18, 0
      %p127 = por %p125, %p126
      %p128 = scmp.ne.s32.totalorder %s117, %s120
      %p129 = scmp.eq.s32.totalorder %s23, 1
      %p130 = por %p128, %p129
      %p131 = scmp.ne.s32.totalorder %s120, %s121
      %p132 = scmp.eq.s32.totalorder %s23, 0
      %p133 = por %p131, %p132
      %p134 = scmp.ne.s32.totalorder %s120, %s121
      %p135 = scmp.eq.s32.totalorder %s24, 1
      %p136 = por %p134, %p135
      %p138 = scmp.ne.s32.totalorder %s121, %s137
      %p139 = scmp.eq.s32.totalorder %s24, 0
      %p140 = por %p138, %p139
      %p141 = scmp.le.s32.totalorder 1, %s18
      %p142 = scmp.lt.s32.totalorder %s18, 3
      %p143 = pnand %p141, %p142
      %p144 = pneg %p143
      // Predicated region
      $region9: #{tpu_custom_call.1} parent=5 // pred_check
        _
      $region10: #{tpu_custom_call.1} parent=5 // pred_check_branch
        %146 = sbr.rel (%p143) target = $region12
      $region11: #{tpu_custom_call.1} parent=5 // pred_region
        %s147 = ssub.s32 %s18, 1
        // Predicated region
        $region13: #{tpu_custom_call.1} parent=11 // pred_check
          %p148 = pneg %p65
        $region14: #{tpu_custom_call.1} parent=11 // pred_check_branch
          %150 = sbr.rel (%p148) target = $region16
        $region15: #{tpu_custom_call.1} parent=11 // pred_region
          %s152 = ssub.s32 16, 16
          %153 = vsyncadd [#allocation6], %s152
          %s155 = sshll.u32 [#allocation5], 4
          %s156 = int_to_ptr.vmem [resolvable:$true] %s155
          %158 = dma.hbm_to_vmem [thread:$0]  %s1, 16, %s156, [#allocation6]
        $region16: #{tpu_custom_call.1} parent=11 // pred_fallthru
          _
        // Predicated region
        $region17: #{tpu_custom_call.1} parent=11 // pred_check
          %p159 = pneg %p86
        $region18: #{tpu_custom_call.1} parent=11 // pred_check_branch
          %161 = sbr.rel (%p159) target = $region20
        $region19: #{tpu_custom_call.1} parent=11 // pred_region
          %s163 = ssub.s32 16, 16
          %164 = vsyncadd [#allocation6], %s163
          %s166 = sshll.u32 [#allocation7], 4
          %s167 = int_to_ptr.vmem [resolvable:$true] %s166
          %169 = dma.hbm_to_vmem [thread:$0]  %s2, 16, %s167, [#allocation6]
        $region20: #{tpu_custom_call.1} parent=11 // pred_fallthru
          _
        // Predicated region
        $region21: #{tpu_custom_call.1} parent=11 // pred_check
          %p170 = pneg %p107
        $region22: #{tpu_custom_call.1} parent=11 // pred_check_branch
          %172 = sbr.rel (%p170) target = $region24
        $region23: #{tpu_custom_call.1} parent=11 // pred_region
          %s174 = ssub.s32 512, 512
          %175 = vsyncadd [#allocation9], %s174
          %s176 = sshll.u32 [#allocation8], 4
          %s177 = int_to_ptr.vmem [resolvable:$true] %s176
          %182 = dma.hbm_to_vmem [thread:$0]  %s3, 512, %s177, [#allocation9], 128, 128, 8
        $region24: #{tpu_custom_call.1} parent=11 // pred_fallthru
          _
      $region12: #{tpu_custom_call.1} parent=5 // pred_fallthru
        _
      %p183 = scmp.lt.s32.totalorder %s18, 2
      // Predicated region
      $region25: #{tpu_custom_call.1} parent=5 // pred_check
        %p184 = pneg %p183
      $region26: #{tpu_custom_call.1} parent=5 // pred_check_branch
        %186 = sbr.rel (%p184) target = $region28
      $region27: #{tpu_custom_call.1} parent=5 // pred_region
        // Predicated region
        $region29: #{tpu_custom_call.1} parent=27 // pred_check
          %p187 = pneg %p38
        $region30: #{tpu_custom_call.1} parent=27 // pred_check_branch
          %189 = sbr.rel (%p187) target = $region32
        $region31: #{tpu_custom_call.1} parent=27 // pred_region
          %s190 = sand.u32 %s28, 1
          %s191 = scalar_lea.sflag [#allocation3], %s190
          %s192 = sand.u32 %s28, 1
          %s193 = smul.addr %s192, 32
          %s194 = scalar_lea.vmem [#allocation2], %s193
          %s196 = ssub.s32 512, 512
          %197 = vsyncadd %s191, %s196
          %s198 = smul.addr %s18, 8
          %s199 = smul.addr %s198, 64
          %s200 = scalar_lea.hbm %s0, %s199
          %s201 = sshll.u32 %s194, 4
          %s202 = int_to_ptr.vmem [resolvable:$true] %s201
          %207 = dma.hbm_to_vmem [thread:$0]  %s200, 512, %s202, %s191, 64, 64, 4
        $region32: #{tpu_custom_call.1} parent=27 // pred_fallthru
          _
      $region28: #{tpu_custom_call.1} parent=5 // pred_fallthru
        _
      %p208 = scmp.le.s32.totalorder 1, %s18
      %p209 = scmp.lt.s32.totalorder %s18, 3
      %p210 = pnand %p208, %p209
      %p211 = pneg %p210
      // Predicated region
      $region33: #{tpu_custom_call.1} parent=5 // pred_check
        _
      $region34: #{tpu_custom_call.1} parent=5 // pred_check_branch
        %213 = sbr.rel (%p210) target = $region36
      $region35: #{tpu_custom_call.1} parent=5 // pred_region
        %s214 = ssub.s32 %s18, 1
        %s215 = sand.u32 %s31, 1
        %s216 = scalar_lea.sflag [#allocation3], %s215
        %s217 = sand.u32 %s31, 1
        %s218 = smul.addr %s217, 32
        %s219 = scalar_lea.vmem [#allocation2], %s218
        // Predicated region
        $region37: #{tpu_custom_call.1} parent=35 // pred_check
          %p220 = pneg %p44
        $region38: #{tpu_custom_call.1} parent=35 // pred_check_branch
          %222 = sbr.rel (%p220) target = $region40
        $region39: #{tpu_custom_call.1} parent=35 // pred_region
          %223 = dma.done %s216, 512
        $region40: #{tpu_custom_call.1} parent=35 // pred_fallthru
          _
        // Predicated region
        $region41: #{tpu_custom_call.1} parent=35 // pred_check
          %p224 = pneg %p65
        $region42: #{tpu_custom_call.1} parent=35 // pred_check_branch
          %226 = sbr.rel (%p224) target = $region44
        $region43: #{tpu_custom_call.1} parent=35 // pred_region
          %227 = dma.done [#allocation6], 16
        $region44: #{tpu_custom_call.1} parent=35 // pred_fallthru
          _
        // Predicated region
        $region45: #{tpu_custom_call.1} parent=35 // pred_check
          %p228 = pneg %p86
        $region46: #{tpu_custom_call.1} parent=35 // pred_check_branch
          %230 = sbr.rel (%p228) target = $region48
        $region47: #{tpu_custom_call.1} parent=35 // pred_region
          %231 = dma.done [#allocation6], 16
        $region48: #{tpu_custom_call.1} parent=35 // pred_fallthru
          _
        // Predicated region
        $region49: #{tpu_custom_call.1} parent=35 // pred_check
          %p232 = pneg %p107
        $region50: #{tpu_custom_call.1} parent=35 // pred_check_branch
          %234 = sbr.rel (%p232) target = $region52
        $region51: #{tpu_custom_call.1} parent=35 // pred_region
          %235 = dma.done [#allocation9], 512
        $region52: #{tpu_custom_call.1} parent=35 // pred_fallthru
          _
        %s236 = sand.u32 %s31, 1
        %s237 = scalar_lea.sflag [#allocation3], %s236
        %s238 = sand.u32 %s31, 1
        %s239 = smul.addr %s238, 32
        %s240 = scalar_lea.vmem [#allocation2], %s239
        %p241 = pneg %p44
        %p242 = pneg %p41
        %p243 = pneg %p65
        %p244 = pneg %p62
        %p245 = pneg %p86
        %p246 = pneg %p83
        %p247 = pneg %p107
        %p248 = pneg %p104
        %p249 = pneg %p133
        %p250 = pneg %p130
        %s251 = sand.u32 %s120, 1
        %s252 = scalar_lea.sflag [#allocation4], %s251
        %s253 = sand.u32 %s120, 1
        %s254 = smul.addr %s253, 32
        %s255 = scalar_lea.vmem [#allocation10], %s254
        %v256 = vld [vmem:[%s219] sm:$0xf]
        %v257 = vld [vmem:[%s219 + $0x4] sm:$0xf]
        %v258 = vld [vmem:[%s219 + $0x8] sm:$0xf]
        %v259 = vld [vmem:[%s219 + $0xc] sm:$0xf]
        %v260 = vld [vmem:[%s219 + $0x10] sm:$0xf]
        %v261 = vld [vmem:[%s219 + $0x14] sm:$0xf]
        %v262 = vld [vmem:[%s219 + $0x18] sm:$0xf]
        %v263 = vld [vmem:[%s219 + $0x1c] sm:$0xf]
        %v264 = vunpack.c.l.bf16 %v256
        %v265 = vunpack.c.l.bf16 %v257
        %v266 = vunpack.c.l.bf16 %v258
        %v267 = vunpack.c.l.bf16 %v259
        %v268 = vunpack.c.l.bf16 %v260
        %v269 = vunpack.c.l.bf16 %v261
        %v270 = vunpack.c.l.bf16 %v262
        %v271 = vunpack.c.l.bf16 %v263
        %v272 = vld [vmem:[#allocation8] sm:$0xff]
        %v273 = vld [vmem:[#allocation8 + $0x8] sm:$0xff]
        %v274 = vld [vmem:[#allocation8 + $0x10] sm:$0xff]
        %v275 = vld [vmem:[#allocation8 + $0x18] sm:$0xff]
        %vm276 = vcmask 261120
        %v277 = vsel %vm276, %v264, 0.0
        %v278 = vsel %vm276, %v265, 0.0
        %v279 = vadd.f32 %v277, %v278
        %v280 = vsel %vm276, %v266, 0.0
        %v281 = vadd.f32 %v279, %v280
        %v282 = vsel %vm276, %v267, 0.0
        %v283 = vadd.f32 %v281, %v282
        %v284 = vsel %vm276, %v268, 0.0
        %v285 = vadd.f32 %v283, %v284
        %v286 = vsel %vm276, %v269, 0.0
        %v287 = vadd.f32 %v285, %v286
        %v288 = vsel %vm276, %v270, 0.0
        %v289 = vadd.f32 %v287, %v288
        %v290 = vsel %vm276, %v271, 0.0
        %v291 = vadd.f32 %v289, %v290
        %v292 = vrot.slane %v291, 4
        %v293 = vadd.f32 %v291, %v292
        %v294 = vrot.slane %v293, 2
        %v295 = vadd.f32 %v293, %v294
        %v296 = vrot.slane %v295, 1
        %v297 = vadd.f32 %v295, %v296
        %v299 = vsel %vm276, %v297, 0
        %301 = vmatprep.subr.mxu0 0.0
        %302 = vmatpush1.msra.mxu0 %v272
        %303 = vmatprep.subr.mxu0 0.0
        %304 = vmatpush1.msra.mxu0 %v273
        %305 = vmatprep.subr.mxu0 0.0
        %306 = vmatpush1.msra.mxu0 %v274
        %307 = vmatprep.subr.mxu0 0.0
        %308 = vmatpush1.msra.mxu0 %v275
        %309 = vmatprep.subr.mxu0 0.0
        %310 = vmatpush1.msra.mxu0 0.0
        %311 = vmatprep.subr.mxu0 0.0
        %312 = vmatpush1.msra.mxu0 0.0
        %313 = vmatprep.subr.mxu0 0.0
        %314 = vmatpush1.msra.mxu0 0.0
        %315 = vmatprep.subr.mxu0 0.0
        %316 = vmatpush1.msra.mxu0 0.0
        %317 = vmatprep.subr.mxu0 0.0
        %318 = vmatpush1.msra.mxu0 0.0
        %319 = vmatprep.subr.mxu0 0.0
        %320 = vmatpush1.msra.mxu0 0.0
        %321 = vmatprep.subr.mxu0 0.0
        %322 = vmatpush1.msra.mxu0 0.0
        %323 = vmatprep.subr.mxu0 0.0
        %324 = vmatpush1.msra.mxu0 0.0
        %325 = vmatprep.subr.mxu0 0.0
        %326 = vmatpush1.msra.mxu0 0.0
        %327 = vmatprep.subr.mxu0 0.0
        %328 = vmatpush1.msra.mxu0 0.0
        %329 = vmatprep.subr.mxu0 0.0
        %330 = vmatpush1.msra.mxu0 0.0
        %331 = vmatprep.subr.mxu0 0.0
        %332 = vmatpush1.msra.mxu0 0.0
        %333 = vmatprep.subr.mxu0 0.0
        %334 = vmatpush1.msra.mxu0 0.0
        %335 = vmatprep.subr.mxu0 0.0
        %336 = vmatpush1.msra.mxu0 0.0
        %337 = vmatprep.subr.mxu0 0.0
        %338 = vmatpush1.msra.mxu0 0.0
        %339 = vmatprep.subr.mxu0 0.0
        %340 = vmatpush1.msra.mxu0 0.0
        %341 = vmatprep.subr.mxu0 0.0
        %342 = vmatpush1.msra.mxu0 0.0
        %343 = vmatprep.subr.mxu0 0.0
        %344 = vmatpush1.msra.mxu0 0.0
        %345 = vmatprep.subr.mxu0 0.0
        %346 = vmatpush1.msra.mxu0 0.0
        %347 = vmatprep.subr.mxu0 0.0
        %348 = vmatpush1.msra.mxu0 0.0
        %349 = vmatprep.subr.mxu0 0.0
        %350 = vmatpush1.msra.mxu0 0.0
        %351 = vmatprep.subr.mxu0 0.0
        %352 = vmatpush1.msra.mxu0 0.0
        %353 = vmatprep.subr.mxu0 0.0
        %354 = vmatpush1.msra.mxu0 0.0
        %355 = vmatprep.subr.mxu0 0.0
        %356 = vmatpush1.msra.mxu0 0.0
        %357 = vmatprep.subr.mxu0 0.0
        %358 = vmatpush1.msra.mxu0 0.0
        %359 = vmatprep.subr.mxu0 0.0
        %360 = vmatpush1.msra.mxu0 0.0
        %361 = vmatprep.subr.mxu0 0.0
        %362 = vmatpush1.msra.mxu0 0.0
        %363 = vmatprep.subr.mxu0 0.0
        %364 = vmatpush1.msra.mxu0 0.0
        %365 = vmatprep.mubr.f32.mxu0 0.0
        %366 = vmatmul.mubr.f32.gmra.mrb[0].mxu0 %v299
        %v367 = vpop.f32.mrb[0].mxu0
        %v368 = vadd.f32 0.0, %v367
        %v369 = vpop.f32.mrb[0].mxu0
        %370 = vdwg.mxu0
        %v371 = vmul.f32 %v368, 0.001953125
        %vm372 = vcmask 31744
        %v374 = vsel %vm372, %v371, 0
        %v377 = vsel %vm372, %v272, 0
        %v380 = vsel %vm372, %v273, 0
        %v383 = vsel %vm372, %v274, 0
        %v386 = vsel %vm372, %v275, 0
        %388 = vmatprep.subr.mxu0 0.0
        %389 = vmatpush1.xpose.msra.mxu0 %v377
        %390 = vmatprep.subr.mxu0 0.0
        %391 = vmatpush1.xpose.msra.mxu0 %v380
        %392 = vmatprep.subr.mxu0 0.0
        %393 = vmatpush1.xpose.msra.mxu0 %v383
        %394 = vmatprep.subr.mxu0 0.0
        %395 = vmatpush1.xpose.msra.mxu0 %v386
        %396 = vmatprep.subr.mxu0 0.0
        %397 = vmatpush1.xpose.msra.mxu0 0.0
        %398 = vmatprep.subr.mxu0 0.0
        %399 = vmatpush1.xpose.msra.mxu0 0.0
        %400 = vmatprep.subr.mxu0 0.0
        %401 = vmatpush1.xpose.msra.mxu0 0.0
        %402 = vmatprep.subr.mxu0 0.0
        %403 = vmatpush1.xpose.msra.mxu0 0.0
        %404 = vmatprep.subr.mxu0 0.0
        %405 = vmatpush1.xpose.msra.mxu0 0.0
        %406 = vmatprep.subr.mxu0 0.0
        %407 = vmatpush1.xpose.msra.mxu0 0.0
        %408 = vmatprep.subr.mxu0 0.0
        %409 = vmatpush1.xpose.msra.mxu0 0.0
        %410 = vmatprep.subr.mxu0 0.0
        %411 = vmatpush1.xpose.msra.mxu0 0.0
        %412 = vmatprep.subr.mxu0 0.0
        %413 = vmatpush1.xpose.msra.mxu0 0.0
        %414 = vmatprep.subr.mxu0 0.0
        %415 = vmatpush1.xpose.msra.mxu0 0.0
        %416 = vmatprep.subr.mxu0 0.0
        %417 = vmatpush1.xpose.msra.mxu0 0.0
        %418 = vmatprep.subr.mxu0 0.0
        %419 = vmatpush1.xpose.msra.mxu0 0.0
        %420 = vmatprep.subr.mxu0 0.0
        %421 = vmatpush1.xpose.msra.mxu0 0.0
        %422 = vmatprep.subr.mxu0 0.0
        %423 = vmatpush1.xpose.msra.mxu0 0.0
        %424 = vmatprep.subr.mxu0 0.0
        %425 = vmatpush1.xpose.msra.mxu0 0.0
        %426 = vmatprep.subr.mxu0 0.0
        %427 = vmatpush1.xpose.msra.mxu0 0.0
        %428 = vmatprep.subr.mxu0 0.0
        %429 = vmatpush1.xpose.msra.mxu0 0.0
        %430 = vmatprep.subr.mxu0 0.0
        %431 = vmatpush1.xpose.msra.mxu0 0.0
        %432 = vmatprep.subr.mxu0 0.0
        %433 = vmatpush1.xpose.msra.mxu0 0.0
        %434 = vmatprep.subr.mxu0 0.0
        %435 = vmatpush1.xpose.msra.mxu0 0.0
        %436 = vmatprep.subr.mxu0 0.0
        %437 = vmatpush1.xpose.msra.mxu0 0.0
        %438 = vmatprep.subr.mxu0 0.0
        %439 = vmatpush1.xpose.msra.mxu0 0.0
        %440 = vmatprep.subr.mxu0 0.0
        %441 = vmatpush1.xpose.msra.mxu0 0.0
        %442 = vmatprep.subr.mxu0 0.0
        %443 = vmatpush1.xpose.msra.mxu0 0.0
        %444 = vmatprep.subr.mxu0 0.0
        %445 = vmatpush1.xpose.msra.mxu0 0.0
        %446 = vmatprep.subr.mxu0 0.0
        %447 = vmatpush1.xpose.msra.mxu0 0.0
        %448 = vmatprep.subr.mxu0 0.0
        %449 = vmatpush1.xpose.msra.mxu0 0.0
        %450 = vmatprep.subr.mxu0 0.0
        %451 = vmatpush1.xpose.msra.mxu0 0.0
        %452 = vmatprep.mubr.f32.mxu0 0.0
        %453 = vmatmul.mubr.f32.gmra.mrb[0].mxu0 %v374
        %v454 = vpop.f32.mrb[0].mxu0
        %v455 = vadd.f32 0.0, %v454
        %v456 = vpop.f32.mrb[0].mxu0
        %457 = vdwg.mxu0
        %v458 = vlaneseq
        %v459 = vshrl.u32 %v458, 7
        %v460 = vsub.s32 0, %v459
        %v461 = vrot.slane %v455, %v460
        %v462 = vsub.f32 %v264, %v461
        %v463 = vsub.f32 %v265, %v461
        %v464 = vsub.f32 %v266, %v461
        %v465 = vsub.f32 %v267, %v461
        %v466 = vsub.f32 %v268, %v461
        %v467 = vsub.f32 %v269, %v461
        %v468 = vsub.f32 %v270, %v461
        %v469 = vsub.f32 %v271, %v461
        %v470 = vmul.f32 %v462, %v462
        %v471 = vmul.f32 %v463, %v463
        %v472 = vmul.f32 %v464, %v464
        %v473 = vmul.f32 %v465, %v465
        %v474 = vmul.f32 %v466, %v466
        %v475 = vmul.f32 %v467, %v467
        %v476 = vmul.f32 %v468, %v468
        %v477 = vmul.f32 %v469, %v469
        %v478 = vsel %vm276, %v470, 0.0
        %v479 = vsel %vm276, %v471, 0.0
        %v480 = vadd.f32 %v478, %v479
        %v481 = vsel %vm276, %v472, 0.0
        %v482 = vadd.f32 %v480, %v481
        %v483 = vsel %vm276, %v473, 0.0
        %v484 = vadd.f32 %v482, %v483
        %v485 = vsel %vm276, %v474, 0.0
        %v486 = vadd.f32 %v484, %v485
        %v487 = vsel %vm276, %v475, 0.0
        %v488 = vadd.f32 %v486, %v487
        %v489 = vsel %vm276, %v476, 0.0
        %v490 = vadd.f32 %v488, %v489
        %v491 = vsel %vm276, %v477, 0.0
        %v492 = vadd.f32 %v490, %v491
        %v493 = vrot.slane %v492, 4
        %v494 = vadd.f32 %v492, %v493
        %v495 = vrot.slane %v494, 2
        %v496 = vadd.f32 %v494, %v495
        %v497 = vrot.slane %v496, 1
        %v498 = vadd.f32 %v496, %v497
        %v500 = vsel %vm276, %v498, 0
        %502 = vmatprep.subr.mxu0 0.0
        %503 = vmatpush1.msra.mxu0 %v272
        %504 = vmatprep.subr.mxu0 0.0
        %505 = vmatpush1.msra.mxu0 %v273
        %506 = vmatprep.subr.mxu0 0.0
        %507 = vmatpush1.msra.mxu0 %v274
        %508 = vmatprep.subr.mxu0 0.0
        %509 = vmatpush1.msra.mxu0 %v275
        %510 = vmatprep.subr.mxu0 0.0
        %511 = vmatpush1.msra.mxu0 0.0
        %512 = vmatprep.subr.mxu0 0.0
        %513 = vmatpush1.msra.mxu0 0.0
        %514 = vmatprep.subr.mxu0 0.0
        %515 = vmatpush1.msra.mxu0 0.0
        %516 = vmatprep.subr.mxu0 0.0
        %517 = vmatpush1.msra.mxu0 0.0
        %518 = vmatprep.subr.mxu0 0.0
        %519 = vmatpush1.msra.mxu0 0.0
        %520 = vmatprep.subr.mxu0 0.0
        %521 = vmatpush1.msra.mxu0 0.0
        %522 = vmatprep.subr.mxu0 0.0
        %523 = vmatpush1.msra.mxu0 0.0
        %524 = vmatprep.subr.mxu0 0.0
        %525 = vmatpush1.msra.mxu0 0.0
        %526 = vmatprep.subr.mxu0 0.0
        %527 = vmatpush1.msra.mxu0 0.0
        %528 = vmatprep.subr.mxu0 0.0
        %529 = vmatpush1.msra.mxu0 0.0
        %530 = vmatprep.subr.mxu0 0.0
        %531 = vmatpush1.msra.mxu0 0.0
        %532 = vmatprep.subr.mxu0 0.0
        %533 = vmatpush1.msra.mxu0 0.0
        %534 = vmatprep.subr.mxu0 0.0
        %535 = vmatpush1.msra.mxu0 0.0
        %536 = vmatprep.subr.mxu0 0.0
        %537 = vmatpush1.msra.mxu0 0.0
        %538 = vmatprep.subr.mxu0 0.0
        %539 = vmatpush1.msra.mxu0 0.0
        %540 = vmatprep.subr.mxu0 0.0
        %541 = vmatpush1.msra.mxu0 0.0
        %542 = vmatprep.subr.mxu0 0.0
        %543 = vmatpush1.msra.mxu0 0.0
        %544 = vmatprep.subr.mxu0 0.0
        %545 = vmatpush1.msra.mxu0 0.0
        %546 = vmatprep.subr.mxu0 0.0
        %547 = vmatpush1.msra.mxu0 0.0
        %548 = vmatprep.subr.mxu0 0.0
        %549 = vmatpush1.msra.mxu0 0.0
        %550 = vmatprep.subr.mxu0 0.0
        %551 = vmatpush1.msra.mxu0 0.0
        %552 = vmatprep.subr.mxu0 0.0
        %553 = vmatpush1.msra.mxu0 0.0
        %554 = vmatprep.subr.mxu0 0.0
        %555 = vmatpush1.msra.mxu0 0.0
        %556 = vmatprep.subr.mxu0 0.0
        %557 = vmatpush1.msra.mxu0 0.0
        %558 = vmatprep.subr.mxu0 0.0
        %559 = vmatpush1.msra.mxu0 0.0
        %560 = vmatprep.subr.mxu0 0.0
        %561 = vmatpush1.msra.mxu0 0.0
        %562 = vmatprep.subr.mxu0 0.0
        %563 = vmatpush1.msra.mxu0 0.0
        %564 = vmatprep.subr.mxu0 0.0
        %565 = vmatpush1.msra.mxu0 0.0
        %566 = vmatprep.mubr.f32.mxu0 0.0
        %567 = vmatmul.mubr.f32.gmra.mrb[0].mxu0 %v500
        %v568 = vpop.f32.mrb[0].mxu0
        %v569 = vadd.f32 0.0, %v568
        %v570 = vpop.f32.mrb[0].mxu0
        %571 = vdwg.mxu0
        %v572 = vmul.f32 %v569, 0.001953125
        %v573 = vadd.f32 %v572, 1e-06
        %v574 = vrsqrt.pop %v573
        %v576 = vsel %vm372, %v574, 0
        %578 = vmatprep.subr.mxu0 0.0
        %579 = vmatpush1.xpose.msra.mxu0 %v377
        %580 = vmatprep.subr.mxu0 0.0
        %581 = vmatpush1.xpose.msra.mxu0 %v380
        %582 = vmatprep.subr.mxu0 0.0
        %583 = vmatpush1.xpose.msra.mxu0 %v383
        %584 = vmatprep.subr.mxu0 0.0
        %585 = vmatpush1.xpose.msra.mxu0 %v386
        %586 = vmatprep.subr.mxu0 0.0
        %587 = vmatpush1.xpose.msra.mxu0 0.0
        %588 = vmatprep.subr.mxu0 0.0
        %589 = vmatpush1.xpose.msra.mxu0 0.0
        %590 = vmatprep.subr.mxu0 0.0
        %591 = vmatpush1.xpose.msra.mxu0 0.0
        %592 = vmatprep.subr.mxu0 0.0
        %593 = vmatpush1.xpose.msra.mxu0 0.0
        %594 = vmatprep.subr.mxu0 0.0
        %595 = vmatpush1.xpose.msra.mxu0 0.0
        %596 = vmatprep.subr.mxu0 0.0
        %597 = vmatpush1.xpose.msra.mxu0 0.0
        %598 = vmatprep.subr.mxu0 0.0
        %599 = vmatpush1.xpose.msra.mxu0 0.0
        %600 = vmatprep.subr.mxu0 0.0
        %601 = vmatpush1.xpose.msra.mxu0 0.0
        %602 = vmatprep.subr.mxu0 0.0
        %603 = vmatpush1.xpose.msra.mxu0 0.0
        %604 = vmatprep.subr.mxu0 0.0
        %605 = vmatpush1.xpose.msra.mxu0 0.0
        %606 = vmatprep.subr.mxu0 0.0
        %607 = vmatpush1.xpose.msra.mxu0 0.0
        %608 = vmatprep.subr.mxu0 0.0
        %609 = vmatpush1.xpose.msra.mxu0 0.0
        %610 = vmatprep.subr.mxu0 0.0
        %611 = vmatpush1.xpose.msra.mxu0 0.0
        %612 = vmatprep.subr.mxu0 0.0
        %613 = vmatpush1.xpose.msra.mxu0 0.0
        %614 = vmatprep.subr.mxu0 0.0
        %615 = vmatpush1.xpose.msra.mxu0 0.0
        %616 = vmatprep.subr.mxu0 0.0
        %617 = vmatpush1.xpose.msra.mxu0 0.0
        %618 = vmatprep.subr.mxu0 0.0
        %619 = vmatpush1.xpose.msra.mxu0 0.0
        %620 = vmatprep.subr.mxu0 0.0
        %621 = vmatpush1.xpose.msra.mxu0 0.0
        %622 = vmatprep.subr.mxu0 0.0
        %623 = vmatpush1.xpose.msra.mxu0 0.0
        %624 = vmatprep.subr.mxu0 0.0
        %625 = vmatpush1.xpose.msra.mxu0 0.0
        %626 = vmatprep.subr.mxu0 0.0
        %627 = vmatpush1.xpose.msra.mxu0 0.0
        %628 = vmatprep.subr.mxu0 0.0
        %629 = vmatpush1.xpose.msra.mxu0 0.0
        %630 = vmatprep.subr.mxu0 0.0
        %631 = vmatpush1.xpose.msra.mxu0 0.0
        %632 = vmatprep.subr.mxu0 0.0
        %633 = vmatpush1.xpose.msra.mxu0 0.0
        %634 = vmatprep.subr.mxu0 0.0
        %635 = vmatpush1.xpose.msra.mxu0 0.0
        %636 = vmatprep.subr.mxu0 0.0
        %637 = vmatpush1.xpose.msra.mxu0 0.0
        %638 = vmatprep.subr.mxu0 0.0
        %639 = vmatpush1.xpose.msra.mxu0 0.0
        %640 = vmatprep.subr.mxu0 0.0
        %641 = vmatpush1.xpose.msra.mxu0 0.0
        %642 = vmatprep.mubr.f32.mxu0 0.0
        %643 = vmatmul.mubr.f32.gmra.mrb[0].mxu0 %v576
        %v644 = vpop.f32.mrb[0].mxu0
        %v645 = vadd.f32 0.0, %v644
        %v646 = vpop.f32.mrb[0].mxu0
        %647 = vdwg.mxu0
        %v648 = vlaneseq
        %v649 = vshrl.u32 %v648, 7
        %v650 = vsub.s32 0, %v649
        %v651 = vrot.slane %v645, %v650
        %v652 = vmul.f32 %v462, %v651
        %v653 = vmul.f32 %v463, %v651
        %v654 = vmul.f32 %v464, %v651
        %v655 = vmul.f32 %v465, %v651
        %v656 = vmul.f32 %v466, %v651
        %v657 = vmul.f32 %v467, %v651
        %v658 = vmul.f32 %v468, %v651
        %v659 = vmul.f32 %v469, %v651
        %v660 = vld [vmem:[#allocation5] sm:$0x1]
        %v662 = vlaneseq
        %v663 = vshrl.u32 %v662, 7
        %v664 = vsub.s32 0, %v663
        %v665 = vrot.slane %v660, %v664
        %v667 = vmul.f32 %v652, %v665
        %v668 = vmul.f32 %v653, %v665
        %v669 = vmul.f32 %v654, %v665
        %v670 = vmul.f32 %v655, %v665
        %v671 = vmul.f32 %v656, %v665
        %v672 = vmul.f32 %v657, %v665
        %v673 = vmul.f32 %v658, %v665
        %v674 = vmul.f32 %v659, %v665
        %v675 = vld [vmem:[#allocation7] sm:$0x1]
        %v677 = vlaneseq
        %v678 = vshrl.u32 %v677, 7
        %v679 = vsub.s32 0, %v678
        %v680 = vrot.slane %v675, %v679
        %v682 = vadd.f32 %v667, %v680
        %v683 = vadd.f32 %v668, %v680
        %v684 = vadd.f32 %v669, %v680
        %v685 = vadd.f32 %v670, %v680
        %v686 = vadd.f32 %v671, %v680
        %v687 = vadd.f32 %v672, %v680
        %v688 = vadd.f32 %v673, %v680
        %v689 = vadd.f32 %v674, %v680
        %v690 = vxor.u32 %v682, 2147483648
        %v691 = vxor.u32 %v683, 2147483648
        %v692 = vxor.u32 %v684, 2147483648
        %v693 = vxor.u32 %v685, 2147483648
        %v694 = vxor.u32 %v686, 2147483648
        %v695 = vxor.u32 %v687, 2147483648
        %v696 = vxor.u32 %v688, 2147483648
        %v697 = vxor.u32 %v689, 2147483648
        %v698 = vmul.f32 %v690, 1.442695
        %v699 = vpow.pop %v698
        %v700 = vmul.f32 %v691, 1.442695
        %v701 = vpow.pop %v700
        %v702 = vmul.f32 %v692, 1.442695
        %v703 = vpow.pop %v702
        %v704 = vmul.f32 %v693, 1.442695
        %v705 = vpow.pop %v704
        %v706 = vmul.f32 %v694, 1.442695
        %v707 = vpow.pop %v706
        %v708 = vmul.f32 %v695, 1.442695
        %v709 = vpow.pop %v708
        %v710 = vmul.f32 %v696, 1.442695
        %v711 = vpow.pop %v710
        %v712 = vmul.f32 %v697, 1.442695
        %v713 = vpow.pop %v712
        %v714 = vadd.f32 %v699, 1.0
        %v715 = vadd.f32 %v701, 1.0
        %v716 = vadd.f32 %v703, 1.0
        %v717 = vadd.f32 %v705, 1.0
        %v718 = vadd.f32 %v707, 1.0
        %v719 = vadd.f32 %v709, 1.0
        %v720 = vadd.f32 %v711, 1.0
        %v721 = vadd.f32 %v713, 1.0
        %v722 = vrcp.pop %v714
        %v723 = vmul.f32 1.0, %v722
        %v724 = vrcp.pop %v715
        %v725 = vmul.f32 1.0, %v724
        %v726 = vrcp.pop %v716
        %v727 = vmul.f32 1.0, %v726
        %v728 = vrcp.pop %v717
        %v729 = vmul.f32 1.0, %v728
        %v730 = vrcp.pop %v718
        %v731 = vmul.f32 1.0, %v730
        %v732 = vrcp.pop %v719
        %v733 = vmul.f32 1.0, %v732
        %v734 = vrcp.pop %v720
        %v735 = vmul.f32 1.0, %v734
        %v736 = vrcp.pop %v721
        %v737 = vmul.f32 1.0, %v736
        %v738 = vmul.f32 %v682, %v723
        %v739 = vmul.f32 %v683, %v725
        %v740 = vmul.f32 %v684, %v727
        %v741 = vmul.f32 %v685, %v729
        %v742 = vmul.f32 %v686, %v731
        %v743 = vmul.f32 %v687, %v733
        %v744 = vmul.f32 %v688, %v735
        %v745 = vmul.f32 %v689, %v737
        %v746 = vpack.c.bf16 %v738, %v738
        %v747 = vpack.c.bf16 %v739, %v739
        %v748 = vpack.c.bf16 %v740, %v740
        %v749 = vpack.c.bf16 %v741, %v741
        %v750 = vpack.c.bf16 %v742, %v742
        %v751 = vpack.c.bf16 %v743, %v743
        %v752 = vpack.c.bf16 %v744, %v744
        %v753 = vpack.c.bf16 %v745, %v745
        %vm754 = vcmask 257024
        %755 = vst.msk [vmem:[%s255] sm:$0xf] %vm754, %v746
        %756 = vst.msk [vmem:[%s255 + $0x4] sm:$0xf] %vm754, %v747
        %757 = vst.msk [vmem:[%s255 + $0x8] sm:$0xf] %vm754, %v748
        %758 = vst.msk [vmem:[%s255 + $0xc] sm:$0xf] %vm754, %v749
        %759 = vst.msk [vmem:[%s255 + $0x10] sm:$0xf] %vm754, %v750
        %760 = vst.msk [vmem:[%s255 + $0x14] sm:$0xf] %vm754, %v751
        %761 = vst.msk [vmem:[%s255 + $0x18] sm:$0xf] %vm754, %v752
        %762 = vst.msk [vmem:[%s255 + $0x1c] sm:$0xf] %vm754, %v753
        %s763 = sand.u32 %s120, 1
        %s764 = scalar_lea.sflag [#allocation4], %s763
        %s765 = sand.u32 %s120, 1
        %s766 = smul.addr %s765, 32
        %s767 = scalar_lea.vmem [#allocation10], %s766
        // Predicated region
        $region53: #{tpu_custom_call.1} parent=35 // pred_check
          %p768 = pneg %p130
        $region54: #{tpu_custom_call.1} parent=35 // pred_check_branch
          %770 = sbr.rel (%p768) target = $region56
        $region55: #{tpu_custom_call.1} parent=35 // pred_region
          %s772 = ssub.s32 512, 512
          %773 = vsyncadd %s764, %s772
          %s774 = smul.addr %s23, 8
          %s775 = smul.addr %s774, 64
          %s776 = scalar_lea.hbm %s4, %s775
          %s777 = sshll.u32 %s767, 4
          %s778 = int_to_ptr.vmem [resolvable:$true] %s777
          %783 = dma.vmem_to_hbm [thread:$0]  %s778, 512, %s776, %s764, 64, 64, 4
        $region56: #{tpu_custom_call.1} parent=35 // pred_fallthru
          _
      $region36: #{tpu_custom_call.1} parent=5 // pred_fallthru
        _
      %p784 = scmp.le.s32.totalorder 2, %s18
      // Predicated region
      $region57: #{tpu_custom_call.1} parent=5 // pred_check
        %p785 = pneg %p784
      $region58: #{tpu_custom_call.1} parent=5 // pred_check_branch
        %787 = sbr.rel (%p785) target = $region60
      $region59: #{tpu_custom_call.1} parent=5 // pred_region
        %s788 = ssub.s32 %s18, 2
        // Predicated region
        $region61: #{tpu_custom_call.1} parent=59 // pred_check
          %p789 = pneg %p136
        $region62: #{tpu_custom_call.1} parent=59 // pred_check_branch
          %791 = sbr.rel (%p789) target = $region64
        $region63: #{tpu_custom_call.1} parent=59 // pred_region
          %s792 = sand.u32 %s121, 1
          %s793 = scalar_lea.sflag [#allocation4], %s792
          %s794 = sand.u32 %s121, 1
          %s795 = smul.addr %s794, 32
          %s796 = scalar_lea.vmem [#allocation10], %s795
          %797 = dma.done %s793, 512
        $region64: #{tpu_custom_call.1} parent=59 // pred_fallthru
          _
      $region60: #{tpu_custom_call.1} parent=5 // pred_fallthru
        _
    $region6: #{tpu_custom_call.1} parent=1 // loop_footer
      %s22 = sadd.s32 1, %s18
    $region7: #{tpu_custom_call.1} parent=1 // loop_footer_branch
      %17 = sbr.rel target = $region3
    $region8: #{tpu_custom_call.1} parent=1 // loop_exit
      _
    %798 = vsyncpa [#allocation3], 1
    %s799 = scalar_lea.sflag [#allocation3], 1
    %800 = vsyncpa %s799, 1
    %801 = vsyncpa [#allocation6], 1
    %802 = vsyncpa [#allocation9], 1
    %803 = vsyncpa [#allocation4], 1
    %s804 = scalar_lea.sflag [#allocation4], 1
    %805 = vsyncpa %s804, 1

</llo_original>
